<compile_context>
chip_gen: v5e
topology: v5e:2x2
jax: 0.10.0
libtpu: 0.0.40
codegen_flags: <defaults>
</compile_context>

<pallas_src>
import functools

import jax
import jax.numpy as jnp
from jax.experimental import pallas as pl
from jax.experimental.pallas import tpu as pltpu


def _kl_loss_kernel(s_ref, t_ref, o_ref, *, inv_t, tile_n, n_rows, mask_rows):
    """One (tile_n, C) block of rows -> replicated f32 partial KL sum."""
    # Load once, do all math in f32 on the VPU/EUP/XLU (inputs may be bf16).
    s = s_ref[...].astype(jnp.float32) * inv_t   # student logits / T
    t = t_ref[...].astype(jnp.float32) * inv_t   # teacher logits / T

    # log_softmax(student / T) along the class (lane) axis.
    s_max = jnp.max(s, axis=-1, keepdims=True)
    s_shift = s - s_max
    log_z = jnp.log(jnp.sum(jnp.exp(s_shift), axis=-1, keepdims=True))
    log_p = s_shift - log_z

    # softmax(teacher / T) + 1e-7; reciprocal-multiply instead of per-element
    # division (only tile_n reciprocals instead of tile_n*C divides).
    t_max = jnp.max(t, axis=-1, keepdims=True)
    t_exp = jnp.exp(t - t_max)
    t_sum = jnp.sum(t_exp, axis=-1, keepdims=True)
    inv_den = pl.reciprocal(t_sum, approx=False)          # exact, (tile_n, 1)
    q = t_exp * inv_den + 1e-7

    kl = q * (jnp.log(q) - log_p)
    kl_row = jnp.sum(kl, axis=-1, keepdims=True)           # (tile_n, 1)

    if mask_rows:
        # Zero out rows that belong to the zero-padded tail of the batch.
        i = pl.program_id(0)
        row_idx = i * tile_n + jax.lax.broadcasted_iota(
            jnp.int32, (tile_n, 1), 0)
        kl_row = jnp.where(row_idx < n_rows, kl_row, 0.0)

    partial = jnp.sum(kl_row)
    # Lane-dense, unmasked (8,128) store of this tile's partial sum.
    o_ref[...] = jnp.full((1, 8, 128), partial, dtype=jnp.float32)


def _pick_tile_n(n, c, itemsize):
    """Largest sane batch tile: ~2 MiB per input block so 2 inputs x 2
    pipeline buffers + the f32 intermediates stay well inside scoped VMEM on
    every generation (v5e/v6e 128 MiB, v7x 64 MiB per TensorCore)."""
    target_block_bytes = 2 * 1024 * 1024
    tile = max(1, target_block_bytes // max(c * itemsize, 1))
    if n < 8:
        return int(n)                      # whole (small) batch in one block
    tile = min(tile, n)
    tile = max(8, (tile // 8) * 8)         # sublane-aligned second-to-last dim
    return int(tile)
    # TODO(synk): for vocab-sized C where even an 8-row block overflows VMEM,
    # switch to a two-pass online-softmax over C tiles (second grid axis).


def kl_loss(output_batch, teacher_outputs, temperature=1.0):
    """Pallas TPU implementation of KL_Loss.forward. Inputs: (N, C) logits."""
    assert output_batch.shape == teacher_outputs.shape
    assert output_batch.ndim == 2
    n, c = output_batch.shape
    itemsize = jnp.dtype(output_batch.dtype).itemsize
    temperature = float(temperature)

    tile_n = _pick_tile_n(n, c, itemsize)
    num_tiles = (n + tile_n - 1) // tile_n
    n_pad = num_tiles * tile_n
    if n_pad != n:
        pad = ((0, n_pad - n), (0, 0))
        output_batch = jnp.pad(output_batch, pad)
        teacher_outputs = jnp.pad(teacher_outputs, pad)

    kernel = functools.partial(
        _kl_loss_kernel,
        inv_t=1.0 / temperature,
        tile_n=tile_n,
        n_rows=n,
        mask_rows=(n_pad != n),
    )

    cost = pl.CostEstimate(
        flops=8 * n * c,
        transcendentals=3 * n * c,
        bytes_accessed=2 * n * c * itemsize + num_tiles * 8 * 128 * 4,
    )

    partials = pl.pallas_call(
        kernel,
        out_shape=jax.ShapeDtypeStruct((num_tiles, 8, 128), jnp.float32),
        grid=(num_tiles,),
        in_specs=[
            pl.BlockSpec((tile_n, c), lambda i: (i, 0)),
            pl.BlockSpec((tile_n, c), lambda i: (i, 0)),
        ],
        out_specs=pl.BlockSpec((1, 8, 128), lambda i: (i, 0, 0)),
        compiler_params=pltpu.CompilerParams(
            dimension_semantics=("parallel",),
            vmem_limit_bytes=48 * 1024 * 1024,
        ),
        cost_estimate=cost,
    )(output_batch, teacher_outputs)

    # Tiny final reduction + scaling in the wrapper (keeps the grid parallel).
    total = jnp.sum(partials[:, 0, 0])
    return (temperature * temperature) * total / n


def _kl_loss_ref(output_batch, teacher_outputs, temperature=1.0):
    """Pure-JAX reference for sanity checking."""
    s = output_batch.astype(jnp.float32) / temperature
    t = teacher_outputs.astype(jnp.float32) / temperature
    log_p = jax.nn.log_softmax(s, axis=1)
    q = jax.nn.softmax(t, axis=1) + 1e-7
    n = output_batch.shape[0]
    return (temperature ** 2) * jnp.sum(q * (jnp.log(q) - log_p)) / n


if __name__ == "__main__":
    key = jax.random.PRNGKey(0)
    k1, k2, k3, k4 = jax.random.split(key, 4)

    # Case 1: small logits, single tile. batch=8, classes=32, T=2.
    N1, C1, T1 = 8, 32, 2.0
    s1 = jax.random.normal(k1, (N1, C1), dtype=jnp.float32)
    t1 = jax.random.normal(k2, (N1, C1), dtype=jnp.float32)
    loss1 = kl_loss(s1, t1, temperature=T1)
    jax.block_until_ready(loss1)
    ref1 = _kl_loss_ref(s1, t1, temperature=T1)
    assert jnp.allclose(loss1, ref1, rtol=1e-4, atol=1e-6), (loss1, ref1)

    # Case 2: multi-tile + padded tail (exercises mask path). batch=20, C=160.
    N2, C2, T2 = 20, 160, 1.0
    s2 = jax.random.normal(k3, (N2, C2), dtype=jnp.float32)
    t2 = jax.random.normal(k4, (N2, C2), dtype=jnp.float32)
    loss2 = kl_loss(s2, t2, temperature=T2)
    jax.block_until_ready(loss2)
    ref2 = _kl_loss_ref(s2, t2, temperature=T2)
    assert jnp.allclose(loss2, ref2, rtol=1e-4, atol=1e-6), (loss2, ref2)

    print("KERNEL_OK")
</pallas_src>

<mosaic_0001>
module attributes {stable_mosaic.version = 11 : i64} {
  func.func @_kl_loss_kernel(%arg0: i32, %arg1: memref<8x32xf32, #tpu.memory_space<vmem>>, %arg2: memref<8x32xf32, #tpu.memory_space<vmem>>, %arg3: memref<1x8x128xf32, #tpu.memory_space<vmem>>) attributes {dimension_semantics = [#tpu.dimension_semantics<parallel>], iteration_bounds = array<i64: 1>, scalar_prefetch = 0 : i64, scratch_operands = 0 : i64, tpu.core_type = #tpu.core_type<tc>, window_params = [{transform_indices = @transform_0, window_bounds = array<i64: 8, 32>}, {transform_indices = @transform_1, window_bounds = array<i64: 8, 32>}, {transform_indices = @transform_2, window_bounds = array<i64: 1, 8, 128>}]} {
    %c0 = arith.constant 0 : index
    %c0_0 = arith.constant 0 : index
    %0 = vector.load %arg1[%c0, %c0_0] : memref<8x32xf32, #tpu.memory_space<vmem>>, vector<8x32xf32>
    %cst = arith.constant 5.000000e-01 : f32
    %1 = vector.broadcast %cst : f32 to vector<8x32xf32>
    %2 = arith.mulf %0, %1 : vector<8x32xf32>
    %c0_1 = arith.constant 0 : index
    %c0_2 = arith.constant 0 : index
    %3 = vector.load %arg2[%c0_1, %c0_2] : memref<8x32xf32, #tpu.memory_space<vmem>>, vector<8x32xf32>
    %cst_3 = arith.constant 5.000000e-01 : f32
    %4 = vector.broadcast %cst_3 : f32 to vector<8x32xf32>
    %5 = arith.mulf %3, %4 : vector<8x32xf32>
    %cst_4 = arith.constant dense<0xFF800000> : vector<8xf32>
    %6 = vector.multi_reduction <maximumf>, %2, %cst_4 [1] : vector<8x32xf32> to vector<8xf32>
    %7 = vector.shape_cast %6 : vector<8xf32> to vector<8x1xf32>
    %8 = vector.broadcast %7 : vector<8x1xf32> to vector<8x32xf32>
    %9 = arith.subf %2, %8 : vector<8x32xf32>
    %10 = math.exp %9 : vector<8x32xf32>
    %cst_5 = arith.constant dense<0.000000e+00> : vector<8xf32>
    %11 = vector.multi_reduction <add>, %10, %cst_5 [1] : vector<8x32xf32> to vector<8xf32>
    %12 = vector.shape_cast %11 : vector<8xf32> to vector<8x1xf32>
    %13 = math.log %12 : vector<8x1xf32>
    %14 = vector.broadcast %13 : vector<8x1xf32> to vector<8x32xf32>
    %15 = arith.subf %9, %14 : vector<8x32xf32>
    %cst_6 = arith.constant dense<0xFF800000> : vector<8xf32>
    %16 = vector.multi_reduction <maximumf>, %5, %cst_6 [1] : vector<8x32xf32> to vector<8xf32>
    %17 = vector.shape_cast %16 : vector<8xf32> to vector<8x1xf32>
    %18 = vector.broadcast %17 : vector<8x1xf32> to vector<8x32xf32>
    %19 = arith.subf %5, %18 : vector<8x32xf32>
    %20 = math.exp %19 : vector<8x32xf32>
    %cst_7 = arith.constant dense<0.000000e+00> : vector<8xf32>
    %21 = vector.multi_reduction <add>, %20, %cst_7 [1] : vector<8x32xf32> to vector<8xf32>
    %22 = vector.shape_cast %21 : vector<8xf32> to vector<8x1xf32>
    %23 = tpu.reciprocal %22 : vector<8x1xf32> -> vector<8x1xf32>
    %24 = vector.broadcast %23 : vector<8x1xf32> to vector<8x32xf32>
    %25 = arith.mulf %20, %24 : vector<8x32xf32>
    %cst_8 = arith.constant 1.000000e-07 : f32
    %26 = vector.broadcast %cst_8 : f32 to vector<8x32xf32>
    %27 = arith.addf %25, %26 : vector<8x32xf32>
    %28 = math.log %27 : vector<8x32xf32>
    %29 = arith.subf %28, %15 : vector<8x32xf32>
    %30 = arith.mulf %27, %29 : vector<8x32xf32>
    %cst_9 = arith.constant dense<0.000000e+00> : vector<8xf32>
    %31 = vector.multi_reduction <add>, %30, %cst_9 [1] : vector<8x32xf32> to vector<8xf32>
    %32 = vector.shape_cast %31 : vector<8xf32> to vector<8x1xf32>
    %33 = vector.shape_cast %32 : vector<8x1xf32> to vector<1x8x1xf32>
    %cst_10 = arith.constant dense<0.000000e+00> : vector<1xf32>
    %34 = vector.multi_reduction <add>, %33, %cst_10 [1, 2] : vector<1x8x1xf32> to vector<1xf32>
    %35 = vector.shape_cast %34 : vector<1xf32> to vector<1x1x1xf32>
    %36 = vector.extract %35[0, 0, 0] : f32 from vector<1x1x1xf32>
    %37 = vector.broadcast %36 : f32 to vector<1x8x128xf32>
    %c0_11 = arith.constant 0 : index
    %c0_12 = arith.constant 0 : index
    %c0_13 = arith.constant 0 : index
    %38 = vector.load %arg3[%c0_11, %c0_12, %c0_13] : memref<1x8x128xf32, #tpu.memory_space<vmem>>, vector<1x8x128xf32>
    tpu.vector_store %arg3[%c0_11, %c0_12, %c0_13], %37 {strides = array<i32>} : memref<1x8x128xf32, #tpu.memory_space<vmem>>, vector<1x8x128xf32>,
    return
  }
  func.func @transform_0(%arg0: i32) -> (i32, i32) {
    %c0_i32 = arith.constant 0 : i32
    %c0_i32_0 = arith.constant 0 : i32
    return %arg0, %c0_i32 : i32, i32
  }
  func.func @transform_1(%arg0: i32) -> (i32, i32) {
    %c0_i32 = arith.constant 0 : i32
    %c0_i32_0 = arith.constant 0 : i32
    return %arg0, %c0_i32 : i32, i32
  }
  func.func @transform_2(%arg0: i32) -> (i32, i32, i32) {
    %c0_i32 = arith.constant 0 : i32
    %c0_i32_0 = arith.constant 0 : i32
    %c0_i32_1 = arith.constant 0 : i32
    return %arg0, %c0_i32, %c0_i32_0 : i32, i32, i32
  }
}

</mosaic_0001>

<llo_original>
// kernel: tpu_custom_call.1
$region0: #{tpu_custom_call.1}
  #allocation0 [shape = 'u32[]', space=smem, size = 0x4, offset = 0x4, fixed_abs, tag = 'smem constant byte address 0x4 - core index']
  #allocation1 [shape = 'u32[72,128]{1,0:T(1,128)}', space=vmem, size = 0x9000, scoped, tag = 'internal scratch']
  %s0 = inlined_call_operand.hbm [shape: f32[8,32], index: 0, kind: input, shape index: {}]
  %s1 = inlined_call_operand.hbm [shape: f32[8,32], index: 1, kind: input, shape index: {}]
  %s2 = inlined_call_operand.hbm [shape: f32[1,8,128], index: 2, kind: output, shape index: {}]
  %s3 = sld [smem:[#allocation0]]
  $region26: #{tpu_custom_call.1} parent=0
    _
  %s5 = ssub.s32 1, %s3
  %s6 = scalar_select 0, %s5, %s3
  $region1: #{tpu_custom_call.1} parent=0
    #allocation2 [shape = 'u8[4096]{0}', space=vmem, size = 0x1000, scoped, tag = 'input window, operand 0, single buffered']
    #allocation3 [shape = 's32[1]{0}', space=sflag, size = 0x4, scoped, tag = 'scoped memory for tpu_custom_call.1']
    #allocation4 [shape = 's32[1]{0}', space=sflag, size = 0x4, scoped, tag = 'scoped memory for tpu_custom_call.1']
    #allocation5 [shape = 'u8[4096]{0}', space=vmem, size = 0x1000, scoped, tag = 'input window, operand 1, single buffered']
    #allocation6 [shape = 's32[1]{0}', space=sflag, size = 0x4, scoped, tag = 'scoped memory for tpu_custom_call.1']
    #allocation7 [shape = 'u8[4096]{0}', space=vmem, size = 0x1000, scoped, tag = 'output window, operand 0, single buffered']
    %7 = vsyncpa [#allocation3], 0
    %8 = vsyncpa [#allocation6], 0
    %9 = vsyncpa [#allocation4], 0
    // Predicated region
    $region2: #{tpu_custom_call.1} parent=1 // pred_check
      _
    $region3: #{tpu_custom_call.1} parent=1 // pred_check_branch
      %11 = sbr.rel (0) target = $region5
    $region4: #{tpu_custom_call.1} parent=1 // pred_region
      %13 = vsyncadd [#allocation3], 0
      %s15 = sshll.u32 %s0, 4
      %s16 = int_to_ptr.hbm [resolvable:$true] %s15
      %s17 = sshll.u32 [#allocation2], 4
      %s18 = int_to_ptr.vmem [resolvable:$true] %s17
      %20 = dma.hbm_to_vmem [thread:$0]  %s16, 128, %s18, [#allocation3]
    $region5: #{tpu_custom_call.1} parent=1 // pred_fallthru
      _
    // Predicated region
    $region6: #{tpu_custom_call.1} parent=1 // pred_check
      _
    $region7: #{tpu_custom_call.1} parent=1 // pred_check_branch
      %22 = sbr.rel (0) target = $region9
    $region8: #{tpu_custom_call.1} parent=1 // pred_region
      %24 = vsyncadd [#allocation6], 0
      %s26 = sshll.u32 %s1, 4
      %s27 = int_to_ptr.hbm [resolvable:$true] %s26
      %s28 = sshll.u32 [#allocation5], 4
      %s29 = int_to_ptr.vmem [resolvable:$true] %s28
      %31 = dma.hbm_to_vmem [thread:$0]  %s27, 128, %s29, [#allocation6]
    $region9: #{tpu_custom_call.1} parent=1 // pred_fallthru
      _
    // Predicated region
    $region10: #{tpu_custom_call.1} parent=1 // pred_check
      _
    $region11: #{tpu_custom_call.1} parent=1 // pred_check_branch
      %33 = sbr.rel (0) target = $region13
    $region12: #{tpu_custom_call.1} parent=1 // pred_region
      %35 = dma.done [#allocation3], 128
    $region13: #{tpu_custom_call.1} parent=1 // pred_fallthru
      _
    // Predicated region
    $region14: #{tpu_custom_call.1} parent=1 // pred_check
      _
    $region15: #{tpu_custom_call.1} parent=1 // pred_check_branch
      %37 = sbr.rel (0) target = $region17
    $region16: #{tpu_custom_call.1} parent=1 // pred_region
      %39 = dma.done [#allocation6], 128
    $region17: #{tpu_custom_call.1} parent=1 // pred_fallthru
      _
    %v40 = vld [vmem:[#allocation2] sm:$0xff]
    %v41 = vmul.f32 %v40, 0.5
    %v42 = vld [vmem:[#allocation5] sm:$0xff]
    %v43 = vmul.f32 %v42, 0.5
    %vm44 = vcmask 261120
    %v45 = vsel %vm44, %v41, -inf
    %46 = vmax.xlane.f32.xlu0 %v45
    %v47 = vpop.xlane.xlu0 %46
    %v48 = vsub.f32 %v41, %v47
    %v49 = vmul.f32 %v48, 1.442695
    %v50 = vpow.pop %v49
    %v51 = vsel %vm44, %v50, 0.0
    %52 = vadd.xlane.f32.xlu0 %v51
    %v53 = vpop.xlane.xlu0 %52
    %v54 = vlog2.pop %v53
    %v55 = vmul.f32 %v54, 0.6931472
    %v56 = vsub.f32 %v48, %v55
    %v57 = vsel %vm44, %v43, -inf
    %58 = vmax.xlane.f32.xlu0 %v57
    %v59 = vpop.xlane.xlu0 %58
    %v60 = vsub.f32 %v43, %v59
    %v61 = vmul.f32 %v60, 1.442695
    %v62 = vpow.pop %v61
    %v63 = vsel %vm44, %v62, 0.0
    %64 = vadd.xlane.f32.xlu0 %v63
    %v65 = vpop.xlane.xlu0 %64
    %v66 = vrcp.pop %v65
    %v67 = vmul.f32 %v65, %v66
    %v68 = vsub.f32 1.0, %v67
    %v69 = vmul.f32 %v66, %v68
    %v70 = vadd.f32 %v66, %v69
    %vm71 = vweird.f32 %v65
    %vm72 = vweird.f32 %v66
    %vm73 = vmor %vm71, %vm72
    %v74 = vsel %vm73, %v66, %v70
    %v75 = vand.u32 2147483647, %v65
    %vm76 = vcmp.eq.f32.partialorder %v75, 8.507059e+37
    %v77 = vand.u32 %v65, 2147483648
    %v78 = vor.u32 1.1754944e-38, %v77
    %v79 = vsel %vm76, %v78, %v74
    %v80 = vmul.f32 %v62, %v79
    %v81 = vadd.f32 %v80, 1e-07
    %v82 = vlog2.pop %v81
    %v83 = vmul.f32 %v82, 0.6931472
    %v84 = vsub.f32 %v83, %v56
    %v85 = vmul.f32 %v81, %v84
    %v86 = vsel %vm44, %v85, 0.0
    %87 = vadd.xlane.f32.xlu0 %v86
    %v88 = vpop.xlane.xlu0 %87
    %vm89 = vcmask 7168
    %v90 = vsel %vm89, %v88, 0.0
    %91 = vadd.xlane.f32.xlu0 %v90
    %v92 = vpop.xlane.xlu0 %91
    %v93 = vrot.slane %v92, 4
    %v94 = vadd.f32 %v92, %v93
    %v95 = vrot.slane %v94, 2
    %v96 = vadd.f32 %v94, %v95
    %v97 = vrot.slane %v96, 1
    %v98 = vadd.f32 %v96, %v97
    %s99 = vtos %v98
    %v100 = vstv %s99
    %101 = vst [vmem:[#allocation7] sm:$0xff] %v100
    // Predicated region
    $region18: #{tpu_custom_call.1} parent=1 // pred_check
      _
    $region19: #{tpu_custom_call.1} parent=1 // pred_check_branch
      %103 = sbr.rel (0) target = $region21
    $region20: #{tpu_custom_call.1} parent=1 // pred_region
      %105 = vsyncadd [#allocation4], 0
      %s107 = sshll.u32 [#allocation7], 4
      %s108 = int_to_ptr.vmem [resolvable:$true] %s107
      %s109 = sshll.u32 %s2, 4
      %s110 = int_to_ptr.hbm [resolvable:$true] %s109
      %112 = dma.vmem_to_hbm [thread:$0]  %s108, 128, %s110, [#allocation4]
    $region21: #{tpu_custom_call.1} parent=1 // pred_fallthru
      _
    // Predicated region
    $region22: #{tpu_custom_call.1} parent=1 // pred_check
      _
    $region23: #{tpu_custom_call.1} parent=1 // pred_check_branch
      %114 = sbr.rel (0) target = $region25
    $region24: #{tpu_custom_call.1} parent=1 // pred_region
      %116 = dma.done [#allocation4], 128
    $region25: #{tpu_custom_call.1} parent=1 // pred_fallthru
      _
    %117 = vsyncpa [#allocation3], 1
    %118 = vsyncpa [#allocation6], 1
    %119 = vsyncpa [#allocation4], 1

</llo_original>
